<compile_context>
chip_gen: v5e
topology: v5e:2x2
jax: 0.10.0
libtpu: 0.0.40
codegen_flags: <defaults>
</compile_context>

<pallas_src>
import functools

import jax
import jax.numpy as jnp
from jax.experimental import pallas as pl
from jax.experimental.pallas import tpu as pltpu

EPS = 1e-12
# Reference prior expert: exp(-logvar)|_{logvar=0} with the stable-exp formula
# = 1 / (exp(0) + eps).  (Rounds to 1.0 in f32, same as the torch reference.)
T_PRIOR = 1.0 / (1.0 + EPS)


# --------------------------- in-kernel helpers ------------------------------

def _mish(y):
    # mish(y) = y * tanh(softplus(y)), rewritten with a single exponential:
    #   t = e^y ; tanh(log(1 + t)) = ((1+t)^2 - 1) / ((1+t)^2 + 1)
    # The exponent is clamped so (1+t)^2 cannot overflow; for y > 20 the ratio
    # is already 1.0 in f32, identical to tanh(softplus(y)).
    t = jnp.exp(jnp.minimum(y, 20.0))
    n = (1.0 + t) * (1.0 + t)
    return y * (n - 1.0) * pl.reciprocal(n + 1.0, approx=True)


def _stable_exp(x):
    # reference `exp`: (x<0)*exp(clamp(x,max=0)) + (x>=0)/(exp(-clamp(x,min=0))+eps)
    neg = (x < 0.0).astype(jnp.float32)
    pos = pl.reciprocal(jnp.exp(-jnp.maximum(x, 0.0)) + EPS, approx=True)
    return neg * jnp.exp(jnp.minimum(x, 0.0)) + (1.0 - neg) * pos


def _linear(h, w_ref, b_ref, act):
    # NOTE: uses JAX's default TPU matmul precision; pass
    # precision=jax.lax.Precision.HIGHEST if bit-parity with torch is needed.
    y = jnp.dot(h, w_ref[...], preferred_element_type=jnp.float32)
    y = y + b_ref[...]                      # (1, Dout) broadcast over rows
    if act == "mish":
        y = _mish(y)
    return y


# ------------------------------ fused kernel --------------------------------

def _sct_fused_kernel(*refs, n_mods, dim_z, n_shared_hidden, n_dec_layers):
    # ---- unpack refs (inputs, then outputs) ----
    idx = 0
    x_refs, e_refs = [], []
    for _ in range(n_mods):
        x_refs.append(refs[idx]); e_refs.append(refs[idx + 1]); idx += 2
    ind_wb = []
    for _ in range(n_mods):
        ind_wb.append((refs[idx], refs[idx + 1])); idx += 2
    shared_hid_wb = []
    for _ in range(n_shared_hidden):
        shared_hid_wb.append((refs[idx], refs[idx + 1])); idx += 2
    w_mu, b_mu, w_lv, b_lv = refs[idx], refs[idx + 1], refs[idx + 2], refs[idx + 3]
    idx += 4
    dec_wb = []
    for _ in range(n_dec_layers):
        dec_wb.append((refs[idx], refs[idx + 1])); idx += 2
    eps_refs = []
    for _ in range(n_mods):
        eps_refs.append(refs[idx]); idx += 1
    zmu_ref, zlv_ref, xr_ref = refs[idx], refs[idx + 1], refs[idx + 2]
    zuni_refs = list(refs[idx + 3: idx + 3 + n_mods])

    # ---- per-modality encode (shared-encoder weight refs reused per mod) ----
    mus, lvs, Ts = [], [], []
    for m in range(n_mods):
        h = jnp.log1p(x_refs[m][...]) * e_refs[m][...]        # preprocess+mask
        w, b = ind_wb[m]
        h = _linear(h, w, b, "mish")                          # indiv encoder
        for (w, b) in shared_hid_wb:                          # shared hidden
            h = _linear(h, w, b, "mish")
        # final shared layer, pre-split on the host into mu / logvar halves
        mu = _linear(h, w_mu, b_mu, None)
        lv = _linear(h, w_lv, b_lv, None)
        mus.append(mu)
        lvs.append(lv)
        Ts.append(_stable_exp(-lv))

    # ---- joint product of experts (N(0, I) prior folded in analytically) ----
    t_sum = T_PRIOR
    num = 0.0
    for m in range(n_mods):
        t_sum = t_sum + Ts[m]
        num = num + mus[m] * Ts[m]
    inv_t_sum = pl.reciprocal(t_sum, approx=True)
    z_mu = num * inv_t_sum
    z_logvar = jnp.log(inv_t_sum + EPS)
    zmu_ref[...] = z_mu
    zlv_ref[...] = z_logvar

    # ---- decoder (eval mode: z = z_mu, batch correction off) ----
    h = z_mu
    for li, (w, b) in enumerate(dec_wb):
        act = "mish" if li < n_dec_layers - 1 else None
        h = _linear(h, w, b, act)
    xr_ref[...] = h                      # lane-dense [tile_n, sum(dims_h)] slab

    # ---- per-modality unimodal PoE + reparameterized sample ----
    for m in range(n_mods):
        inv_m = pl.reciprocal(T_PRIOR + Ts[m], approx=True)
        mu_m = mus[m] * Ts[m] * inv_m
        lv_m = jnp.log(inv_m + EPS)
        zuni_refs[m][...] = mu_m + jnp.exp(0.5 * lv_m) * eps_refs[m][...]


# ----------------------------- parameter setup ------------------------------

def mlp_init(key, features, out_trans=None):
    """MLP(features, hid_trans='mish', out_trans=out_trans, norm/drop off)."""
    params = []
    for i in range(1, len(features)):
        key, kw, kb = jax.random.split(key, 3)
        fan_in = features[i - 1]
        bound = fan_in ** -0.5
        W = jax.random.uniform(kw, (features[i - 1], features[i]),
                               jnp.float32, -bound, bound)
        b = jax.random.uniform(kb, (1, features[i]),
                               jnp.float32, -bound, bound)
        act = "mish" if i < len(features) - 1 else out_trans
        params.append((W, b, act))
    return params


def sct_init(key, o):
    params = {}
    key, k = jax.random.split(key)
    params["x_shared_enc"] = mlp_init(k, o["dims_enc_x"] + [o["dim_z"] * 2])
    params["x_indiv_enc"] = {}
    for m in o["ref_mods"]:
        key, k = jax.random.split(key)
        params["x_indiv_enc"][m] = mlp_init(
            k, [o["dims_h"][m], o["dims_enc_x"][0]], out_trans="mish")
    key, k = jax.random.split(key)
    params["x_dec"] = mlp_init(
        k, [o["dim_z"]] + o["dims_dec_x"] + [sum(o["dims_h"].values())])
    return params


# ------------------------------ SCT forward ---------------------------------

def _pick_tile(n, target=512):
    """Largest batch tile that keeps blocks legal and VMEM use well bounded."""
    if n <= target:
        return n
    for t in (target, 256, 128, 64, 32, 16, 8):
        if n % t == 0:
            return t
    return n


def sct_forward(params, o, inputs, key):
    x, e = inputs["x"], inputs["e"]
    mods = o["ref_mods"]
    n_mods = len(mods)
    dim_z, dim_c = o["dim_z"], o["dim_c"]
    dims_h = o["dims_h"]
    sum_h = sum(dims_h[m] for m in mods)
    N = x[mods[0]].shape[0]
    tile_n = _pick_tile(N)
    grid = (N // tile_n,)

    # host-side eps for the reparameterized z_uni samples (torch.randn analog)
    eps = {}
    for m in mods:
        key, k = jax.random.split(key)
        eps[m] = jax.random.normal(k, (N, dim_z), jnp.float32)

    def row_spec(d):
        return pl.BlockSpec((tile_n, d), lambda i: (i, 0))

    def full_spec(shape):
        return pl.BlockSpec(shape, lambda i: (0, 0))   # resident across grid

    args, in_specs = [], []
    # modality data (tiled over batch)
    for m in mods:
        args += [x[m], e[m]]
        in_specs += [row_spec(dims_h[m]), row_spec(dims_h[m])]
    # individual encoders
    for m in mods:
        W, b, _ = params["x_indiv_enc"][m][0]
        args += [W, b]
        in_specs += [full_spec(W.shape), full_spec(b.shape)]
    # shared encoder: hidden layers + final layer pre-split into mu / logvar
    shared = params["x_shared_enc"]
    n_shared_hidden = len(shared) - 1
    for W, b, _ in shared[:-1]:
        args += [W, b]
        in_specs += [full_spec(W.shape), full_spec(b.shape)]
    W_last, b_last, _ = shared[-1]
    w_mu, w_lv = W_last[:, :dim_z], W_last[:, dim_z:]
    b_mu, b_lv = b_last[:, :dim_z], b_last[:, dim_z:]
    for a in (w_mu, b_mu, w_lv, b_lv):
        args.append(a)
        in_specs.append(full_spec(a.shape))
    # decoder
    dec = params["x_dec"]
    n_dec_layers = len(dec)
    for W, b, _ in dec:
        args += [W, b]
        in_specs += [full_spec(W.shape), full_spec(b.shape)]
    # eps (tiled over batch)
    for m in mods:
        args.append(eps[m])
        in_specs.append(row_spec(dim_z))

    out_shape = tuple(
        [jax.ShapeDtypeStruct((N, dim_z), jnp.float32),      # z_mu
         jax.ShapeDtypeStruct((N, dim_z), jnp.float32),      # z_logvar
         jax.ShapeDtypeStruct((N, sum_h), jnp.float32)]      # decoder slab
        + [jax.ShapeDtypeStruct((N, dim_z), jnp.float32)] * n_mods)  # z_uni
    out_specs = tuple([row_spec(dim_z), row_spec(dim_z), row_spec(sum_h)]
                      + [row_spec(dim_z)] * n_mods)

    kernel = functools.partial(
        _sct_fused_kernel, n_mods=n_mods, dim_z=dim_z,
        n_shared_hidden=n_shared_hidden, n_dec_layers=n_dec_layers)

    outs = pl.pallas_call(
        kernel,
        out_shape=out_shape,
        grid=grid,
        in_specs=in_specs,
        out_specs=out_specs,
        compiler_params=pltpu.CompilerParams(
            dimension_semantics=("parallel",),
            vmem_limit_bytes=32 * 1024 * 1024),
    )(*args)

    z_mu, z_logvar, x_r_flat = outs[0], outs[1], outs[2]
    z_uni_list = outs[3:]

    z = z_mu                                       # eval mode: sampling off
    c, b = z[:, :dim_c], z[:, dim_c:]

    x_r_pre, off = {}, 0
    for m in mods:
        d = dims_h[m]
        x_r_pre[m] = x_r_flat[:, off:off + d]
        off += d
    s_r_pre = None                                 # no 's' expert on this path

    z_uni, c_all = {}, {}
    for i, m in enumerate(mods):
        z_uni[m] = z_uni_list[i]
        c_all[m] = z_uni[m][:, :dim_c]
    c_all["joint"] = c

    return x_r_pre, s_r_pre, z_mu, z_logvar, z, c, b, z_uni, c_all


# ----------------------------------- main -----------------------------------

if __name__ == "__main__":
    o = dict(
        ref_mods=["rna", "adt"],
        dims_x={"rna": 40, "adt": 24},
        dims_h={"rna": 40, "adt": 24},
        dims_enc_x=[32, 16],
        dim_z=8, dim_c=5, dim_b=3,
        dims_dec_x=[16, 32],
    )

    key = jax.random.PRNGKey(0)
    kp, kx1, kx2, ke1, ke2, ks = jax.random.split(key, 6)

    params = sct_init(kp, o)

    N = 2
    x = {"rna": jax.random.uniform(kx1, (N, 40), jnp.float32, 0.0, 5.0),
         "adt": jax.random.uniform(kx2, (N, 24), jnp.float32, 0.0, 5.0)}
    e = {"rna": jax.random.bernoulli(ke1, 0.9, (N, 40)).astype(jnp.float32),
         "adt": jax.random.bernoulli(ke2, 0.9, (N, 24)).astype(jnp.float32)}

    outputs = sct_forward(params, o, {"x": x, "e": e}, ks)
    jax.block_until_ready(outputs)
    print("KERNEL_OK")
</pallas_src>

<mosaic_0001>
module attributes {stable_mosaic.version = 11 : i64} {
  func.func @_sct_fused_kernel(%arg0: i32, %arg1: memref<2x40xf32, #tpu.memory_space<vmem>>, %arg2: memref<2x40xf32, #tpu.memory_space<vmem>>, %arg3: memref<2x24xf32, #tpu.memory_space<vmem>>, %arg4: memref<2x24xf32, #tpu.memory_space<vmem>>, %arg5: memref<40x32xf32, #tpu.memory_space<vmem>>, %arg6: memref<1x32xf32, #tpu.memory_space<vmem>>, %arg7: memref<24x32xf32, #tpu.memory_space<vmem>>, %arg8: memref<1x32xf32, #tpu.memory_space<vmem>>, %arg9: memref<32x16xf32, #tpu.memory_space<vmem>>, %arg10: memref<1x16xf32, #tpu.memory_space<vmem>>, %arg11: memref<16x8xf32, #tpu.memory_space<vmem>>, %arg12: memref<1x8xf32, #tpu.memory_space<vmem>>, %arg13: memref<16x8xf32, #tpu.memory_space<vmem>>, %arg14: memref<1x8xf32, #tpu.memory_space<vmem>>, %arg15: memref<8x16xf32, #tpu.memory_space<vmem>>, %arg16: memref<1x16xf32, #tpu.memory_space<vmem>>, %arg17: memref<16x32xf32, #tpu.memory_space<vmem>>, %arg18: memref<1x32xf32, #tpu.memory_space<vmem>>, %arg19: memref<32x64xf32, #tpu.memory_space<vmem>>, %arg20: memref<1x64xf32, #tpu.memory_space<vmem>>, %arg21: memref<2x8xf32, #tpu.memory_space<vmem>>, %arg22: memref<2x8xf32, #tpu.memory_space<vmem>>, %arg23: memref<2x8xf32, #tpu.memory_space<vmem>>, %arg24: memref<2x8xf32, #tpu.memory_space<vmem>>, %arg25: memref<2x64xf32, #tpu.memory_space<vmem>>, %arg26: memref<2x8xf32, #tpu.memory_space<vmem>>, %arg27: memref<2x8xf32, #tpu.memory_space<vmem>>) attributes {dimension_semantics = [#tpu.dimension_semantics<parallel>], iteration_bounds = array<i64: 1>, scalar_prefetch = 0 : i64, scratch_operands = 0 : i64, tpu.core_type = #tpu.core_type<tc>, window_params = [{transform_indices = @transform_0, window_bounds = array<i64: 2, 40>}, {transform_indices = @transform_1, window_bounds = array<i64: 2, 40>}, {transform_indices = @transform_2, window_bounds = array<i64: 2, 24>}, {transform_indices = @transform_3, window_bounds = array<i64: 2, 24>}, {pipeline_mode = #tpu.pipeline_mode<synchronous>, transform_indices = @transform_4, window_bounds = array<i64: 40, 32>}, {pipeline_mode = #tpu.pipeline_mode<synchronous>, transform_indices = @transform_5, window_bounds = array<i64: 1, 32>}, {pipeline_mode = #tpu.pipeline_mode<synchronous>, transform_indices = @transform_6, window_bounds = array<i64: 24, 32>}, {pipeline_mode = #tpu.pipeline_mode<synchronous>, transform_indices = @transform_7, window_bounds = array<i64: 1, 32>}, {pipeline_mode = #tpu.pipeline_mode<synchronous>, transform_indices = @transform_8, window_bounds = array<i64: 32, 16>}, {pipeline_mode = #tpu.pipeline_mode<synchronous>, transform_indices = @transform_9, window_bounds = array<i64: 1, 16>}, {pipeline_mode = #tpu.pipeline_mode<synchronous>, transform_indices = @transform_10, window_bounds = array<i64: 16, 8>}, {pipeline_mode = #tpu.pipeline_mode<synchronous>, transform_indices = @transform_11, window_bounds = array<i64: 1, 8>}, {pipeline_mode = #tpu.pipeline_mode<synchronous>, transform_indices = @transform_12, window_bounds = array<i64: 16, 8>}, {pipeline_mode = #tpu.pipeline_mode<synchronous>, transform_indices = @transform_13, window_bounds = array<i64: 1, 8>}, {pipeline_mode = #tpu.pipeline_mode<synchronous>, transform_indices = @transform_14, window_bounds = array<i64: 8, 16>}, {pipeline_mode = #tpu.pipeline_mode<synchronous>, transform_indices = @transform_15, window_bounds = array<i64: 1, 16>}, {pipeline_mode = #tpu.pipeline_mode<synchronous>, transform_indices = @transform_16, window_bounds = array<i64: 16, 32>}, {pipeline_mode = #tpu.pipeline_mode<synchronous>, transform_indices = @transform_17, window_bounds = array<i64: 1, 32>}, {pipeline_mode = #tpu.pipeline_mode<synchronous>, transform_indices = @transform_18, window_bounds = array<i64: 32, 64>}, {pipeline_mode = #tpu.pipeline_mode<synchronous>, transform_indices = @transform_19, window_bounds = array<i64: 1, 64>}, {transform_indices = @transform_20, window_bounds = array<i64: 2, 8>}, {transform_indices = @transform_21, window_bounds = array<i64: 2, 8>}, {transform_indices = @transform_22, window_bounds = array<i64: 2, 8>}, {transform_indices = @transform_23, window_bounds = array<i64: 2, 8>}, {transform_indices = @transform_24, window_bounds = array<i64: 2, 64>}, {transform_indices = @transform_25, window_bounds = array<i64: 2, 8>}, {transform_indices = @transform_26, window_bounds = array<i64: 2, 8>}]} {
    %c0 = arith.constant 0 : index
    %c0_0 = arith.constant 0 : index
    %0 = vector.load %arg1[%c0, %c0_0] : memref<2x40xf32, #tpu.memory_space<vmem>>, vector<2x40xf32>
    %1 = math.log1p %0 : vector<2x40xf32>
    %c0_1 = arith.constant 0 : index
    %c0_2 = arith.constant 0 : index
    %2 = vector.load %arg2[%c0_1, %c0_2] : memref<2x40xf32, #tpu.memory_space<vmem>>, vector<2x40xf32>
    %3 = arith.mulf %1, %2 : vector<2x40xf32>
    %c0_3 = arith.constant 0 : index
    %c0_4 = arith.constant 0 : index
    %4 = vector.load %arg5[%c0_3, %c0_4] : memref<40x32xf32, #tpu.memory_space<vmem>>, vector<40x32xf32>
    %cst = arith.constant dense<0.000000e+00> : vector<2x32xf32>
    %5 = tpu.matmul %3, %4, %cst {dimension_numbers = #tpu.dot_dimension_numbers<[1], [0], [0], [1], [0, 0, 1, 1], [], []>} : vector<2x40xf32>, vector<40x32xf32>, vector<2x32xf32> -> vector<2x32xf32>
    %c0_5 = arith.constant 0 : index
    %c0_6 = arith.constant 0 : index
    %6 = vector.load %arg6[%c0_5, %c0_6] : memref<1x32xf32, #tpu.memory_space<vmem>>, vector<1x32xf32>
    %7 = vector.broadcast %6 : vector<1x32xf32> to vector<2x32xf32>
    %8 = arith.addf %5, %7 : vector<2x32xf32>
    %cst_7 = arith.constant 2.000000e+01 : f32
    %9 = vector.broadcast %cst_7 : f32 to vector<2x32xf32>
    %10 = arith.minimumf %8, %9 : vector<2x32xf32>
    %11 = math.exp %10 : vector<2x32xf32>
    %cst_8 = arith.constant 1.000000e+00 : f32
    %12 = vector.broadcast %cst_8 : f32 to vector<2x32xf32>
    %13 = arith.addf %12, %11 : vector<2x32xf32>
    %cst_9 = arith.constant 1.000000e+00 : f32
    %14 = vector.broadcast %cst_9 : f32 to vector<2x32xf32>
    %15 = arith.addf %14, %11 : vector<2x32xf32>
    %16 = arith.mulf %13, %15 : vector<2x32xf32>
    %cst_10 = arith.constant 1.000000e+00 : f32
    %17 = vector.broadcast %cst_10 : f32 to vector<2x32xf32>
    %18 = arith.subf %16, %17 : vector<2x32xf32>
    %19 = arith.mulf %8, %18 : vector<2x32xf32>
    %cst_11 = arith.constant 1.000000e+00 : f32
    %20 = vector.broadcast %cst_11 : f32 to vector<2x32xf32>
    %21 = arith.addf %16, %20 : vector<2x32xf32>
    %22 = tpu.reciprocal %21 {approx = true} : vector<2x32xf32> -> vector<2x32xf32>
    %23 = arith.mulf %19, %22 : vector<2x32xf32>
    %c0_12 = arith.constant 0 : index
    %c0_13 = arith.constant 0 : index
    %24 = vector.load %arg9[%c0_12, %c0_13] : memref<32x16xf32, #tpu.memory_space<vmem>>, vector<32x16xf32>
    %cst_14 = arith.constant dense<0.000000e+00> : vector<2x16xf32>
    %25 = tpu.matmul %23, %24, %cst_14 {dimension_numbers = #tpu.dot_dimension_numbers<[1], [0], [0], [1], [0, 0, 1, 1], [], []>} : vector<2x32xf32>, vector<32x16xf32>, vector<2x16xf32> -> vector<2x16xf32>
    %c0_15 = arith.constant 0 : index
    %c0_16 = arith.constant 0 : index
    %26 = vector.load %arg10[%c0_15, %c0_16] : memref<1x16xf32, #tpu.memory_space<vmem>>, vector<1x16xf32>
    %27 = vector.broadcast %26 : vector<1x16xf32> to vector<2x16xf32>
    %28 = arith.addf %25, %27 : vector<2x16xf32>
    %cst_17 = arith.constant 2.000000e+01 : f32
    %29 = vector.broadcast %cst_17 : f32 to vector<2x16xf32>
    %30 = arith.minimumf %28, %29 : vector<2x16xf32>
    %31 = math.exp %30 : vector<2x16xf32>
    %cst_18 = arith.constant 1.000000e+00 : f32
    %32 = vector.broadcast %cst_18 : f32 to vector<2x16xf32>
    %33 = arith.addf %32, %31 : vector<2x16xf32>
    %cst_19 = arith.constant 1.000000e+00 : f32
    %34 = vector.broadcast %cst_19 : f32 to vector<2x16xf32>
    %35 = arith.addf %34, %31 : vector<2x16xf32>
    %36 = arith.mulf %33, %35 : vector<2x16xf32>
    %cst_20 = arith.constant 1.000000e+00 : f32
    %37 = vector.broadcast %cst_20 : f32 to vector<2x16xf32>
    %38 = arith.subf %36, %37 : vector<2x16xf32>
    %39 = arith.mulf %28, %38 : vector<2x16xf32>
    %cst_21 = arith.constant 1.000000e+00 : f32
    %40 = vector.broadcast %cst_21 : f32 to vector<2x16xf32>
    %41 = arith.addf %36, %40 : vector<2x16xf32>
    %42 = tpu.reciprocal %41 {approx = true} : vector<2x16xf32> -> vector<2x16xf32>
    %43 = arith.mulf %39, %42 : vector<2x16xf32>
    %c0_22 = arith.constant 0 : index
    %c0_23 = arith.constant 0 : index
    %44 = vector.load %arg11[%c0_22, %c0_23] : memref<16x8xf32, #tpu.memory_space<vmem>>, vector<16x8xf32>
    %cst_24 = arith.constant dense<0.000000e+00> : vector<2x8xf32>
    %45 = tpu.matmul %43, %44, %cst_24 {dimension_numbers = #tpu.dot_dimension_numbers<[1], [0], [0], [1], [0, 0, 1, 1], [], []>} : vector<2x16xf32>, vector<16x8xf32>, vector<2x8xf32> -> vector<2x8xf32>
    %c0_25 = arith.constant 0 : index
    %c0_26 = arith.constant 0 : index
    %46 = vector.load %arg12[%c0_25, %c0_26] : memref<1x8xf32, #tpu.memory_space<vmem>>, vector<1x8xf32>
    %47 = vector.broadcast %46 : vector<1x8xf32> to vector<2x8xf32>
    %48 = arith.addf %45, %47 : vector<2x8xf32>
    %c0_27 = arith.constant 0 : index
    %c0_28 = arith.constant 0 : index
    %49 = vector.load %arg13[%c0_27, %c0_28] : memref<16x8xf32, #tpu.memory_space<vmem>>, vector<16x8xf32>
    %cst_29 = arith.constant dense<0.000000e+00> : vector<2x8xf32>
    %50 = tpu.matmul %43, %49, %cst_29 {dimension_numbers = #tpu.dot_dimension_numbers<[1], [0], [0], [1], [0, 0, 1, 1], [], []>} : vector<2x16xf32>, vector<16x8xf32>, vector<2x8xf32> -> vector<2x8xf32>
    %c0_30 = arith.constant 0 : index
    %c0_31 = arith.constant 0 : index
    %51 = vector.load %arg14[%c0_30, %c0_31] : memref<1x8xf32, #tpu.memory_space<vmem>>, vector<1x8xf32>
    %52 = vector.broadcast %51 : vector<1x8xf32> to vector<2x8xf32>
    %53 = arith.addf %50, %52 : vector<2x8xf32>
    %cst_32 = arith.constant 0.000000e+00 : f32
    %54 = vector.broadcast %cst_32 : f32 to vector<2x8xf32>
    %55 = arith.subf %54, %53 : vector<2x8xf32>
    %cst_33 = arith.constant 0.000000e+00 : f32
    %56 = vector.broadcast %cst_33 : f32 to vector<2x8xf32>
    %57 = arith.cmpf olt, %55, %56 : vector<2x8xf32>
    %58 = arith.extui %57 : vector<2x8xi1> to vector<2x8xi32>
    %59 = arith.sitofp %58 : vector<2x8xi32> to vector<2x8xf32>
    %cst_34 = arith.constant 0.000000e+00 : f32
    %60 = vector.broadcast %cst_34 : f32 to vector<2x8xf32>
    %61 = arith.maximumf %55, %60 : vector<2x8xf32>
    %cst_35 = arith.constant 0.000000e+00 : f32
    %62 = vector.broadcast %cst_35 : f32 to vector<2x8xf32>
    %63 = arith.subf %62, %61 : vector<2x8xf32>
    %64 = math.exp %63 : vector<2x8xf32>
    %cst_36 = arith.constant 9.99999996E-13 : f32
    %65 = vector.broadcast %cst_36 : f32 to vector<2x8xf32>
    %66 = arith.addf %64, %65 : vector<2x8xf32>
    %67 = tpu.reciprocal %66 {approx = true} : vector<2x8xf32> -> vector<2x8xf32>
    %cst_37 = arith.constant 0.000000e+00 : f32
    %68 = vector.broadcast %cst_37 : f32 to vector<2x8xf32>
    %69 = arith.minimumf %55, %68 : vector<2x8xf32>
    %70 = math.exp %69 : vector<2x8xf32>
    %71 = arith.mulf %59, %70 : vector<2x8xf32>
    %cst_38 = arith.constant 1.000000e+00 : f32
    %72 = vector.broadcast %cst_38 : f32 to vector<2x8xf32>
    %73 = arith.subf %72, %59 : vector<2x8xf32>
    %74 = arith.mulf %73, %67 : vector<2x8xf32>
    %75 = arith.addf %71, %74 : vector<2x8xf32>
    %c0_39 = arith.constant 0 : index
    %c0_40 = arith.constant 0 : index
    %76 = vector.load %arg3[%c0_39, %c0_40] : memref<2x24xf32, #tpu.memory_space<vmem>>, vector<2x24xf32>
    %77 = math.log1p %76 : vector<2x24xf32>
    %c0_41 = arith.constant 0 : index
    %c0_42 = arith.constant 0 : index
    %78 = vector.load %arg4[%c0_41, %c0_42] : memref<2x24xf32, #tpu.memory_space<vmem>>, vector<2x24xf32>
    %79 = arith.mulf %77, %78 : vector<2x24xf32>
    %c0_43 = arith.constant 0 : index
    %c0_44 = arith.constant 0 : index
    %80 = vector.load %arg7[%c0_43, %c0_44] : memref<24x32xf32, #tpu.memory_space<vmem>>, vector<24x32xf32>
    %cst_45 = arith.constant dense<0.000000e+00> : vector<2x32xf32>
    %81 = tpu.matmul %79, %80, %cst_45 {dimension_numbers = #tpu.dot_dimension_numbers<[1], [0], [0], [1], [0, 0, 1, 1], [], []>} : vector<2x24xf32>, vector<24x32xf32>, vector<2x32xf32> -> vector<2x32xf32>
    %c0_46 = arith.constant 0 : index
    %c0_47 = arith.constant 0 : index
    %82 = vector.load %arg8[%c0_46, %c0_47] : memref<1x32xf32, #tpu.memory_space<vmem>>, vector<1x32xf32>
    %83 = vector.broadcast %82 : vector<1x32xf32> to vector<2x32xf32>
    %84 = arith.addf %81, %83 : vector<2x32xf32>
    %cst_48 = arith.constant 2.000000e+01 : f32
    %85 = vector.broadcast %cst_48 : f32 to vector<2x32xf32>
    %86 = arith.minimumf %84, %85 : vector<2x32xf32>
    %87 = math.exp %86 : vector<2x32xf32>
    %cst_49 = arith.constant 1.000000e+00 : f32
    %88 = vector.broadcast %cst_49 : f32 to vector<2x32xf32>
    %89 = arith.addf %88, %87 : vector<2x32xf32>
    %cst_50 = arith.constant 1.000000e+00 : f32
    %90 = vector.broadcast %cst_50 : f32 to vector<2x32xf32>
    %91 = arith.addf %90, %87 : vector<2x32xf32>
    %92 = arith.mulf %89, %91 : vector<2x32xf32>
    %cst_51 = arith.constant 1.000000e+00 : f32
    %93 = vector.broadcast %cst_51 : f32 to vector<2x32xf32>
    %94 = arith.subf %92, %93 : vector<2x32xf32>
    %95 = arith.mulf %84, %94 : vector<2x32xf32>
    %cst_52 = arith.constant 1.000000e+00 : f32
    %96 = vector.broadcast %cst_52 : f32 to vector<2x32xf32>
    %97 = arith.addf %92, %96 : vector<2x32xf32>
    %98 = tpu.reciprocal %97 {approx = true} : vector<2x32xf32> -> vector<2x32xf32>
    %99 = arith.mulf %95, %98 : vector<2x32xf32>
    %c0_53 = arith.constant 0 : index
    %c0_54 = arith.constant 0 : index
    %100 = vector.load %arg9[%c0_53, %c0_54] : memref<32x16xf32, #tpu.memory_space<vmem>>, vector<32x16xf32>
    %cst_55 = arith.constant dense<0.000000e+00> : vector<2x16xf32>
    %101 = tpu.matmul %99, %100, %cst_55 {dimension_numbers = #tpu.dot_dimension_numbers<[1], [0], [0], [1], [0, 0, 1, 1], [], []>} : vector<2x32xf32>, vector<32x16xf32>, vector<2x16xf32> -> vector<2x16xf32>
    %c0_56 = arith.constant 0 : index
    %c0_57 = arith.constant 0 : index
    %102 = vector.load %arg10[%c0_56, %c0_57] : memref<1x16xf32, #tpu.memory_space<vmem>>, vector<1x16xf32>
    %103 = vector.broadcast %102 : vector<1x16xf32> to vector<2x16xf32>
    %104 = arith.addf %101, %103 : vector<2x16xf32>
    %cst_58 = arith.constant 2.000000e+01 : f32
    %105 = vector.broadcast %cst_58 : f32 to vector<2x16xf32>
    %106 = arith.minimumf %104, %105 : vector<2x16xf32>
    %107 = math.exp %106 : vector<2x16xf32>
    %cst_59 = arith.constant 1.000000e+00 : f32
    %108 = vector.broadcast %cst_59 : f32 to vector<2x16xf32>
    %109 = arith.addf %108, %107 : vector<2x16xf32>
    %cst_60 = arith.constant 1.000000e+00 : f32
    %110 = vector.broadcast %cst_60 : f32 to vector<2x16xf32>
    %111 = arith.addf %110, %107 : vector<2x16xf32>
    %112 = arith.mulf %109, %111 : vector<2x16xf32>
    %cst_61 = arith.constant 1.000000e+00 : f32
    %113 = vector.broadcast %cst_61 : f32 to vector<2x16xf32>
    %114 = arith.subf %112, %113 : vector<2x16xf32>
    %115 = arith.mulf %104, %114 : vector<2x16xf32>
    %cst_62 = arith.constant 1.000000e+00 : f32
    %116 = vector.broadcast %cst_62 : f32 to vector<2x16xf32>
    %117 = arith.addf %112, %116 : vector<2x16xf32>
    %118 = tpu.reciprocal %117 {approx = true} : vector<2x16xf32> -> vector<2x16xf32>
    %119 = arith.mulf %115, %118 : vector<2x16xf32>
    %c0_63 = arith.constant 0 : index
    %c0_64 = arith.constant 0 : index
    %120 = vector.load %arg11[%c0_63, %c0_64] : memref<16x8xf32, #tpu.memory_space<vmem>>, vector<16x8xf32>
    %cst_65 = arith.constant dense<0.000000e+00> : vector<2x8xf32>
    %121 = tpu.matmul %119, %120, %cst_65 {dimension_numbers = #tpu.dot_dimension_numbers<[1], [0], [0], [1], [0, 0, 1, 1], [], []>} : vector<2x16xf32>, vector<16x8xf32>, vector<2x8xf32> -> vector<2x8xf32>
    %c0_66 = arith.constant 0 : index
    %c0_67 = arith.constant 0 : index
    %122 = vector.load %arg12[%c0_66, %c0_67] : memref<1x8xf32, #tpu.memory_space<vmem>>, vector<1x8xf32>
    %123 = vector.broadcast %122 : vector<1x8xf32> to vector<2x8xf32>
    %124 = arith.addf %121, %123 : vector<2x8xf32>
    %c0_68 = arith.constant 0 : index
    %c0_69 = arith.constant 0 : index
    %125 = vector.load %arg13[%c0_68, %c0_69] : memref<16x8xf32, #tpu.memory_space<vmem>>, vector<16x8xf32>
    %cst_70 = arith.constant dense<0.000000e+00> : vector<2x8xf32>
    %126 = tpu.matmul %119, %125, %cst_70 {dimension_numbers = #tpu.dot_dimension_numbers<[1], [0], [0], [1], [0, 0, 1, 1], [], []>} : vector<2x16xf32>, vector<16x8xf32>, vector<2x8xf32> -> vector<2x8xf32>
    %c0_71 = arith.constant 0 : index
    %c0_72 = arith.constant 0 : index
    %127 = vector.load %arg14[%c0_71, %c0_72] : memref<1x8xf32, #tpu.memory_space<vmem>>, vector<1x8xf32>
    %128 = vector.broadcast %127 : vector<1x8xf32> to vector<2x8xf32>
    %129 = arith.addf %126, %128 : vector<2x8xf32>
    %cst_73 = arith.constant 0.000000e+00 : f32
    %130 = vector.broadcast %cst_73 : f32 to vector<2x8xf32>
    %131 = arith.subf %130, %129 : vector<2x8xf32>
    %cst_74 = arith.constant 0.000000e+00 : f32
    %132 = vector.broadcast %cst_74 : f32 to vector<2x8xf32>
    %133 = arith.cmpf olt, %131, %132 : vector<2x8xf32>
    %134 = arith.extui %133 : vector<2x8xi1> to vector<2x8xi32>
    %135 = arith.sitofp %134 : vector<2x8xi32> to vector<2x8xf32>
    %cst_75 = arith.constant 0.000000e+00 : f32
    %136 = vector.broadcast %cst_75 : f32 to vector<2x8xf32>
    %137 = arith.maximumf %131, %136 : vector<2x8xf32>
    %cst_76 = arith.constant 0.000000e+00 : f32
    %138 = vector.broadcast %cst_76 : f32 to vector<2x8xf32>
    %139 = arith.subf %138, %137 : vector<2x8xf32>
    %140 = math.exp %139 : vector<2x8xf32>
    %cst_77 = arith.constant 9.99999996E-13 : f32
    %141 = vector.broadcast %cst_77 : f32 to vector<2x8xf32>
    %142 = arith.addf %140, %141 : vector<2x8xf32>
    %143 = tpu.reciprocal %142 {approx = true} : vector<2x8xf32> -> vector<2x8xf32>
    %cst_78 = arith.constant 0.000000e+00 : f32
    %144 = vector.broadcast %cst_78 : f32 to vector<2x8xf32>
    %145 = arith.minimumf %131, %144 : vector<2x8xf32>
    %146 = math.exp %145 : vector<2x8xf32>
    %147 = arith.mulf %135, %146 : vector<2x8xf32>
    %cst_79 = arith.constant 1.000000e+00 : f32
    %148 = vector.broadcast %cst_79 : f32 to vector<2x8xf32>
    %149 = arith.subf %148, %135 : vector<2x8xf32>
    %150 = arith.mulf %149, %143 : vector<2x8xf32>
    %151 = arith.addf %147, %150 : vector<2x8xf32>
    %cst_80 = arith.constant 1.000000e+00 : f32
    %152 = vector.broadcast %cst_80 : f32 to vector<2x8xf32>
    %153 = arith.addf %152, %75 : vector<2x8xf32>
    %154 = arith.mulf %48, %75 : vector<2x8xf32>
    %cst_81 = arith.constant 0.000000e+00 : f32
    %155 = vector.broadcast %cst_81 : f32 to vector<2x8xf32>
    %156 = arith.addf %155, %154 : vector<2x8xf32>
    %157 = arith.addf %153, %151 : vector<2x8xf32>
    %158 = arith.mulf %124, %151 : vector<2x8xf32>
    %159 = arith.addf %156, %158 : vector<2x8xf32>
    %160 = tpu.reciprocal %157 {approx = true} : vector<2x8xf32> -> vector<2x8xf32>
    %161 = arith.mulf %159, %160 : vector<2x8xf32>
    %cst_82 = arith.constant 9.99999996E-13 : f32
    %162 = vector.broadcast %cst_82 : f32 to vector<2x8xf32>
    %163 = arith.addf %160, %162 : vector<2x8xf32>
    %164 = math.log %163 : vector<2x8xf32>
    %c0_83 = arith.constant 0 : index
    %c0_84 = arith.constant 0 : index
    %165 = vector.load %arg23[%c0_83, %c0_84] : memref<2x8xf32, #tpu.memory_space<vmem>>, vector<2x8xf32>
    tpu.vector_store %arg23[%c0_83, %c0_84], %161 {strides = array<i32>} : memref<2x8xf32, #tpu.memory_space<vmem>>, vector<2x8xf32>,
    %c0_85 = arith.constant 0 : index
    %c0_86 = arith.constant 0 : index
    %166 = vector.load %arg24[%c0_85, %c0_86] : memref<2x8xf32, #tpu.memory_space<vmem>>, vector<2x8xf32>
    tpu.vector_store %arg24[%c0_85, %c0_86], %164 {strides = array<i32>} : memref<2x8xf32, #tpu.memory_space<vmem>>, vector<2x8xf32>,
    %c0_87 = arith.constant 0 : index
    %c0_88 = arith.constant 0 : index
    %167 = vector.load %arg15[%c0_87, %c0_88] : memref<8x16xf32, #tpu.memory_space<vmem>>, vector<8x16xf32>
    %cst_89 = arith.constant dense<0.000000e+00> : vector<2x16xf32>
    %168 = tpu.matmul %161, %167, %cst_89 {dimension_numbers = #tpu.dot_dimension_numbers<[1], [0], [0], [1], [0, 0, 1, 1], [], []>} : vector<2x8xf32>, vector<8x16xf32>, vector<2x16xf32> -> vector<2x16xf32>
    %c0_90 = arith.constant 0 : index
    %c0_91 = arith.constant 0 : index
    %169 = vector.load %arg16[%c0_90, %c0_91] : memref<1x16xf32, #tpu.memory_space<vmem>>, vector<1x16xf32>
    %170 = vector.broadcast %169 : vector<1x16xf32> to vector<2x16xf32>
    %171 = arith.addf %168, %170 : vector<2x16xf32>
    %cst_92 = arith.constant 2.000000e+01 : f32
    %172 = vector.broadcast %cst_92 : f32 to vector<2x16xf32>
    %173 = arith.minimumf %171, %172 : vector<2x16xf32>
    %174 = math.exp %173 : vector<2x16xf32>
    %cst_93 = arith.constant 1.000000e+00 : f32
    %175 = vector.broadcast %cst_93 : f32 to vector<2x16xf32>
    %176 = arith.addf %175, %174 : vector<2x16xf32>
    %cst_94 = arith.constant 1.000000e+00 : f32
    %177 = vector.broadcast %cst_94 : f32 to vector<2x16xf32>
    %178 = arith.addf %177, %174 : vector<2x16xf32>
    %179 = arith.mulf %176, %178 : vector<2x16xf32>
    %cst_95 = arith.constant 1.000000e+00 : f32
    %180 = vector.broadcast %cst_95 : f32 to vector<2x16xf32>
    %181 = arith.subf %179, %180 : vector<2x16xf32>
    %182 = arith.mulf %171, %181 : vector<2x16xf32>
    %cst_96 = arith.constant 1.000000e+00 : f32
    %183 = vector.broadcast %cst_96 : f32 to vector<2x16xf32>
    %184 = arith.addf %179, %183 : vector<2x16xf32>
    %185 = tpu.reciprocal %184 {approx = true} : vector<2x16xf32> -> vector<2x16xf32>
    %186 = arith.mulf %182, %185 : vector<2x16xf32>
    %c0_97 = arith.constant 0 : index
    %c0_98 = arith.constant 0 : index
    %187 = vector.load %arg17[%c0_97, %c0_98] : memref<16x32xf32, #tpu.memory_space<vmem>>, vector<16x32xf32>
    %cst_99 = arith.constant dense<0.000000e+00> : vector<2x32xf32>
    %188 = tpu.matmul %186, %187, %cst_99 {dimension_numbers = #tpu.dot_dimension_numbers<[1], [0], [0], [1], [0, 0, 1, 1], [], []>} : vector<2x16xf32>, vector<16x32xf32>, vector<2x32xf32> -> vector<2x32xf32>
    %c0_100 = arith.constant 0 : index
    %c0_101 = arith.constant 0 : index
    %189 = vector.load %arg18[%c0_100, %c0_101] : memref<1x32xf32, #tpu.memory_space<vmem>>, vector<1x32xf32>
    %190 = vector.broadcast %189 : vector<1x32xf32> to vector<2x32xf32>
    %191 = arith.addf %188, %190 : vector<2x32xf32>
    %cst_102 = arith.constant 2.000000e+01 : f32
    %192 = vector.broadcast %cst_102 : f32 to vector<2x32xf32>
    %193 = arith.minimumf %191, %192 : vector<2x32xf32>
    %194 = math.exp %193 : vector<2x32xf32>
    %cst_103 = arith.constant 1.000000e+00 : f32
    %195 = vector.broadcast %cst_103 : f32 to vector<2x32xf32>
    %196 = arith.addf %195, %194 : vector<2x32xf32>
    %cst_104 = arith.constant 1.000000e+00 : f32
    %197 = vector.broadcast %cst_104 : f32 to vector<2x32xf32>
    %198 = arith.addf %197, %194 : vector<2x32xf32>
    %199 = arith.mulf %196, %198 : vector<2x32xf32>
    %cst_105 = arith.constant 1.000000e+00 : f32
    %200 = vector.broadcast %cst_105 : f32 to vector<2x32xf32>
    %201 = arith.subf %199, %200 : vector<2x32xf32>
    %202 = arith.mulf %191, %201 : vector<2x32xf32>
    %cst_106 = arith.constant 1.000000e+00 : f32
    %203 = vector.broadcast %cst_106 : f32 to vector<2x32xf32>
    %204 = arith.addf %199, %203 : vector<2x32xf32>
    %205 = tpu.reciprocal %204 {approx = true} : vector<2x32xf32> -> vector<2x32xf32>
    %206 = arith.mulf %202, %205 : vector<2x32xf32>
    %c0_107 = arith.constant 0 : index
    %c0_108 = arith.constant 0 : index
    %207 = vector.load %arg19[%c0_107, %c0_108] : memref<32x64xf32, #tpu.memory_space<vmem>>, vector<32x64xf32>
    %cst_109 = arith.constant dense<0.000000e+00> : vector<2x64xf32>
    %208 = tpu.matmul %206, %207, %cst_109 {dimension_numbers = #tpu.dot_dimension_numbers<[1], [0], [0], [1], [0, 0, 1, 1], [], []>} : vector<2x32xf32>, vector<32x64xf32>, vector<2x64xf32> -> vector<2x64xf32>
    %c0_110 = arith.constant 0 : index
    %c0_111 = arith.constant 0 : index
    %209 = vector.load %arg20[%c0_110, %c0_111] : memref<1x64xf32, #tpu.memory_space<vmem>>, vector<1x64xf32>
    %210 = vector.broadcast %209 : vector<1x64xf32> to vector<2x64xf32>
    %211 = arith.addf %208, %210 : vector<2x64xf32>
    %c0_112 = arith.constant 0 : index
    %c0_113 = arith.constant 0 : index
    %212 = vector.load %arg25[%c0_112, %c0_113] : memref<2x64xf32, #tpu.memory_space<vmem>>, vector<2x64xf32>
    tpu.vector_store %arg25[%c0_112, %c0_113], %211 {strides = array<i32>} : memref<2x64xf32, #tpu.memory_space<vmem>>, vector<2x64xf32>,
    %cst_114 = arith.constant 1.000000e+00 : f32
    %213 = vector.broadcast %cst_114 : f32 to vector<2x8xf32>
    %214 = arith.addf %213, %75 : vector<2x8xf32>
    %215 = tpu.reciprocal %214 {approx = true} : vector<2x8xf32> -> vector<2x8xf32>
    %216 = arith.mulf %48, %75 : vector<2x8xf32>
    %217 = arith.mulf %216, %215 : vector<2x8xf32>
    %cst_115 = arith.constant 9.99999996E-13 : f32
    %218 = vector.broadcast %cst_115 : f32 to vector<2x8xf32>
    %219 = arith.addf %215, %218 : vector<2x8xf32>
    %220 = math.log %219 : vector<2x8xf32>
    %cst_116 = arith.constant 5.000000e-01 : f32
    %221 = vector.broadcast %cst_116 : f32 to vector<2x8xf32>
    %222 = arith.mulf %221, %220 : vector<2x8xf32>
    %223 = math.exp %222 : vector<2x8xf32>
    %c0_117 = arith.constant 0 : index
    %c0_118 = arith.constant 0 : index
    %224 = vector.load %arg21[%c0_117, %c0_118] : memref<2x8xf32, #tpu.memory_space<vmem>>, vector<2x8xf32>
    %225 = arith.mulf %223, %224 : vector<2x8xf32>
    %226 = arith.addf %217, %225 : vector<2x8xf32>
    %c0_119 = arith.constant 0 : index
    %c0_120 = arith.constant 0 : index
    %227 = vector.load %arg26[%c0_119, %c0_120] : memref<2x8xf32, #tpu.memory_space<vmem>>, vector<2x8xf32>
    tpu.vector_store %arg26[%c0_119, %c0_120], %226 {strides = array<i32>} : memref<2x8xf32, #tpu.memory_space<vmem>>, vector<2x8xf32>,
    %cst_121 = arith.constant 1.000000e+00 : f32
    %228 = vector.broadcast %cst_121 : f32 to vector<2x8xf32>
    %229 = arith.addf %228, %151 : vector<2x8xf32>
    %230 = tpu.reciprocal %229 {approx = true} : vector<2x8xf32> -> vector<2x8xf32>
    %231 = arith.mulf %124, %151 : vector<2x8xf32>
    %232 = arith.mulf %231, %230 : vector<2x8xf32>
    %cst_122 = arith.constant 9.99999996E-13 : f32
    %233 = vector.broadcast %cst_122 : f32 to vector<2x8xf32>
    %234 = arith.addf %230, %233 : vector<2x8xf32>
    %235 = math.log %234 : vector<2x8xf32>
    %cst_123 = arith.constant 5.000000e-01 : f32
    %236 = vector.broadcast %cst_123 : f32 to vector<2x8xf32>
    %237 = arith.mulf %236, %235 : vector<2x8xf32>
    %238 = math.exp %237 : vector<2x8xf32>
    %c0_124 = arith.constant 0 : index
    %c0_125 = arith.constant 0 : index
    %239 = vector.load %arg22[%c0_124, %c0_125] : memref<2x8xf32, #tpu.memory_space<vmem>>, vector<2x8xf32>
    %240 = arith.mulf %238, %239 : vector<2x8xf32>
    %241 = arith.addf %232, %240 : vector<2x8xf32>
    %c0_126 = arith.constant 0 : index
    %c0_127 = arith.constant 0 : index
    %242 = vector.load %arg27[%c0_126, %c0_127] : memref<2x8xf32, #tpu.memory_space<vmem>>, vector<2x8xf32>
    tpu.vector_store %arg27[%c0_126, %c0_127], %241 {strides = array<i32>} : memref<2x8xf32, #tpu.memory_space<vmem>>, vector<2x8xf32>,
    return
  }
  func.func @transform_0(%arg0: i32) -> (i32, i32) {
    %c0_i32 = arith.constant 0 : i32
    %c0_i32_0 = arith.constant 0 : i32
    return %arg0, %c0_i32 : i32, i32
  }
  func.func @transform_1(%arg0: i32) -> (i32, i32) {
    %c0_i32 = arith.constant 0 : i32
    %c0_i32_0 = arith.constant 0 : i32
    return %arg0, %c0_i32 : i32, i32
  }
  func.func @transform_2(%arg0: i32) -> (i32, i32) {
    %c0_i32 = arith.constant 0 : i32
    %c0_i32_0 = arith.constant 0 : i32
    return %arg0, %c0_i32 : i32, i32
  }
  func.func @transform_3(%arg0: i32) -> (i32, i32) {
    %c0_i32 = arith.constant 0 : i32
    %c0_i32_0 = arith.constant 0 : i32
    return %arg0, %c0_i32 : i32, i32
  }
  func.func @transform_4(%arg0: i32) -> (i32, i32) {
    %c0_i32 = arith.constant 0 : i32
    %c0_i32_0 = arith.constant 0 : i32
    %c0_i32_1 = arith.constant 0 : i32
    return %c0_i32, %c0_i32_0 : i32, i32
  }
  func.func @transform_5(%arg0: i32) -> (i32, i32) {
    %c0_i32 = arith.constant 0 : i32
    %c0_i32_0 = arith.constant 0 : i32
    %c0_i32_1 = arith.constant 0 : i32
    return %c0_i32, %c0_i32_0 : i32, i32
  }
  func.func @transform_6(%arg0: i32) -> (i32, i32) {
    %c0_i32 = arith.constant 0 : i32
    %c0_i32_0 = arith.constant 0 : i32
    %c0_i32_1 = arith.constant 0 : i32
    return %c0_i32, %c0_i32_0 : i32, i32
  }
  func.func @transform_7(%arg0: i32) -> (i32, i32) {
    %c0_i32 = arith.constant 0 : i32
    %c0_i32_0 = arith.constant 0 : i32
    %c0_i32_1 = arith.constant 0 : i32
    return %c0_i32, %c0_i32_0 : i32, i32
  }
  func.func @transform_8(%arg0: i32) -> (i32, i32) {
    %c0_i32 = arith.constant 0 : i32
    %c0_i32_0 = arith.constant 0 : i32
    %c0_i32_1 = arith.constant 0 : i32
    return %c0_i32, %c0_i32_0 : i32, i32
  }
  func.func @transform_9(%arg0: i32) -> (i32, i32) {
    %c0_i32 = arith.constant 0 : i32
    %c0_i32_0 = arith.constant 0 : i32
    %c0_i32_1 = arith.constant 0 : i32
    return %c0_i32, %c0_i32_0 : i32, i32
  }
  func.func @transform_10(%arg0: i32) -> (i32, i32) {
    %c0_i32 = arith.constant 0 : i32
    %c0_i32_0 = arith.constant 0 : i32
    %c0_i32_1 = arith.constant 0 : i32
    return %c0_i32, %c0_i32_0 : i32, i32
  }
  func.func @transform_11(%arg0: i32) -> (i32, i32) {
    %c0_i32 = arith.constant 0 : i32
    %c0_i32_0 = arith.constant 0 : i32
    %c0_i32_1 = arith.constant 0 : i32
    return %c0_i32, %c0_i32_0 : i32, i32
  }
  func.func @transform_12(%arg0: i32) -> (i32, i32) {
    %c0_i32 = arith.constant 0 : i32
    %c0_i32_0 = arith.constant 0 : i32
    %c0_i32_1 = arith.constant 0 : i32
    return %c0_i32, %c0_i32_0 : i32, i32
  }
  func.func @transform_13(%arg0: i32) -> (i32, i32) {
    %c0_i32 = arith.constant 0 : i32
    %c0_i32_0 = arith.constant 0 : i32
    %c0_i32_1 = arith.constant 0 : i32
    return %c0_i32, %c0_i32_0 : i32, i32
  }
  func.func @transform_14(%arg0: i32) -> (i32, i32) {
    %c0_i32 = arith.constant 0 : i32
    %c0_i32_0 = arith.constant 0 : i32
    %c0_i32_1 = arith.constant 0 : i32
    return %c0_i32, %c0_i32_0 : i32, i32
  }
  func.func @transform_15(%arg0: i32) -> (i32, i32) {
    %c0_i32 = arith.constant 0 : i32
    %c0_i32_0 = arith.constant 0 : i32
    %c0_i32_1 = arith.constant 0 : i32
    return %c0_i32, %c0_i32_0 : i32, i32
  }
  func.func @transform_16(%arg0: i32) -> (i32, i32) {
    %c0_i32 = arith.constant 0 : i32
    %c0_i32_0 = arith.constant 0 : i32
    %c0_i32_1 = arith.constant 0 : i32
    return %c0_i32, %c0_i32_0 : i32, i32
  }
  func.func @transform_17(%arg0: i32) -> (i32, i32) {
    %c0_i32 = arith.constant 0 : i32
    %c0_i32_0 = arith.constant 0 : i32
    %c0_i32_1 = arith.constant 0 : i32
    return %c0_i32, %c0_i32_0 : i32, i32
  }
  func.func @transform_18(%arg0: i32) -> (i32, i32) {
    %c0_i32 = arith.constant 0 : i32
    %c0_i32_0 = arith.constant 0 : i32
    %c0_i32_1 = arith.constant 0 : i32
    return %c0_i32, %c0_i32_0 : i32, i32
  }
  func.func @transform_19(%arg0: i32) -> (i32, i32) {
    %c0_i32 = arith.constant 0 : i32
    %c0_i32_0 = arith.constant 0 : i32
    %c0_i32_1 = arith.constant 0 : i32
    return %c0_i32, %c0_i32_0 : i32, i32
  }
  func.func @transform_20(%arg0: i32) -> (i32, i32) {
    %c0_i32 = arith.constant 0 : i32
    %c0_i32_0 = arith.constant 0 : i32
    return %arg0, %c0_i32 : i32, i32
  }
  func.func @transform_21(%arg0: i32) -> (i32, i32) {
    %c0_i32 = arith.constant 0 : i32
    %c0_i32_0 = arith.constant 0 : i32
    return %arg0, %c0_i32 : i32, i32
  }
  func.func @transform_22(%arg0: i32) -> (i32, i32) {
    %c0_i32 = arith.constant 0 : i32
    %c0_i32_0 = arith.constant 0 : i32
    return %arg0, %c0_i32 : i32, i32
  }
  func.func @transform_23(%arg0: i32) -> (i32, i32) {
    %c0_i32 = arith.constant 0 : i32
    %c0_i32_0 = arith.constant 0 : i32
    return %arg0, %c0_i32 : i32, i32
  }
  func.func @transform_24(%arg0: i32) -> (i32, i32) {
    %c0_i32 = arith.constant 0 : i32
    %c0_i32_0 = arith.constant 0 : i32
    return %arg0, %c0_i32 : i32, i32
  }
  func.func @transform_25(%arg0: i32) -> (i32, i32) {
    %c0_i32 = arith.constant 0 : i32
    %c0_i32_0 = arith.constant 0 : i32
    return %arg0, %c0_i32 : i32, i32
  }
  func.func @transform_26(%arg0: i32) -> (i32, i32) {
    %c0_i32 = arith.constant 0 : i32
    %c0_i32_0 = arith.constant 0 : i32
    return %arg0, %c0_i32 : i32, i32
  }
}

</mosaic_0001>

<llo_original>
// kernel: tpu_custom_call.1
$region0: #{tpu_custom_call.1}
  #allocation0 [shape = 'u32[]', space=smem, size = 0x4, offset = 0x4, fixed_abs, tag = 'smem constant byte address 0x4 - core index']
  #allocation1 [shape = 'u32[72,128]{1,0:T(1,128)}', space=vmem, size = 0x9000, scoped, tag = 'internal scratch']
  %s0 = inlined_call_operand.vmem [shape: f32[2,40], index: 0, kind: input, shape index: {}]
  %s1 = inlined_call_operand.vmem [shape: f32[2,40], index: 1, kind: input, shape index: {}]
  %s2 = inlined_call_operand.vmem [shape: f32[2,24], index: 2, kind: input, shape index: {}]
  %s3 = inlined_call_operand.vmem [shape: f32[2,24], index: 3, kind: input, shape index: {}]
  %s4 = inlined_call_operand.vmem [shape: f32[40,32], index: 4, kind: input, shape index: {}]
  %s5 = inlined_call_operand.vmem [shape: f32[1,32], index: 5, kind: input, shape index: {}]
  %s6 = inlined_call_operand.vmem [shape: f32[24,32], index: 6, kind: input, shape index: {}]
  %s7 = inlined_call_operand.vmem [shape: f32[1,32], index: 7, kind: input, shape index: {}]
  %s8 = inlined_call_operand.vmem [shape: f32[32,16], index: 8, kind: input, shape index: {}]
  %s9 = inlined_call_operand.vmem [shape: f32[1,16], index: 9, kind: input, shape index: {}]
  %s10 = inlined_call_operand.vmem [shape: f32[16,8], index: 10, kind: input, shape index: {}]
  %s11 = inlined_call_operand.vmem [shape: f32[1,8], index: 11, kind: input, shape index: {}]
  %s12 = inlined_call_operand.vmem [shape: f32[16,8], index: 12, kind: input, shape index: {}]
  %s13 = inlined_call_operand.vmem [shape: f32[1,8], index: 13, kind: input, shape index: {}]
  %s14 = inlined_call_operand.vmem [shape: f32[8,16], index: 14, kind: input, shape index: {}]
  %s15 = inlined_call_operand.vmem [shape: f32[1,16], index: 15, kind: input, shape index: {}]
  %s16 = inlined_call_operand.vmem [shape: f32[16,32], index: 16, kind: input, shape index: {}]
  %s17 = inlined_call_operand.vmem [shape: f32[1,32], index: 17, kind: input, shape index: {}]
  %s18 = inlined_call_operand.vmem [shape: f32[32,64], index: 18, kind: input, shape index: {}]
  %s19 = inlined_call_operand.vmem [shape: f32[1,64], index: 19, kind: input, shape index: {}]
  %s20 = inlined_call_operand.vmem [shape: f32[2,8], index: 20, kind: input, shape index: {}]
  %s21 = inlined_call_operand.vmem [shape: f32[2,8], index: 21, kind: input, shape index: {}]
  %s22 = inlined_call_operand.hbm [shape: f32[2,8], index: 22, kind: output, shape index: {0}]
  %s23 = inlined_call_operand.hbm [shape: f32[2,8], index: 23, kind: output, shape index: {1}]
  %s24 = inlined_call_operand.hbm [shape: f32[2,64], index: 24, kind: output, shape index: {2}]
  %s25 = inlined_call_operand.hbm [shape: f32[2,8], index: 25, kind: output, shape index: {3}]
  %s26 = inlined_call_operand.hbm [shape: f32[2,8], index: 26, kind: output, shape index: {4}]
  %27 = xla_tuple %s22, %s23, %s24, %s25, %s26
  %s28 = sld [smem:[#allocation0]]
  $region130: #{tpu_custom_call.1} parent=0
    _
  %s30 = ssub.s32 1, %s28
  %s31 = scalar_select 0, %s30, %s28
  $region1: #{tpu_custom_call.1} parent=0
    #allocation2 [shape = 'u8[1024]{0}', space=vmem, size = 0x400, scoped, tag = 'output window, operand 0, single buffered']
    #allocation3 [shape = 's32[1]{0}', space=sflag, size = 0x4, scoped, tag = 'scoped memory for tpu_custom_call.1']
    #allocation4 [shape = 'u8[1024]{0}', space=vmem, size = 0x400, scoped, tag = 'output window, operand 1, single buffered']
    #allocation5 [shape = 's32[1]{0}', space=sflag, size = 0x4, scoped, tag = 'scoped memory for tpu_custom_call.1']
    #allocation6 [shape = 'u8[1024]{0}', space=vmem, size = 0x400, scoped, tag = 'output window, operand 2, single buffered']
    #allocation7 [shape = 'u8[1024]{0}', space=vmem, size = 0x400, scoped, tag = 'output window, operand 3, single buffered']
    #allocation8 [shape = 's32[1]{0}', space=sflag, size = 0x4, scoped, tag = 'scoped memory for tpu_custom_call.1']
    #allocation9 [shape = 'u8[1024]{0}', space=vmem, size = 0x400, scoped, tag = 'output window, operand 4, single buffered']
    %32 = vsyncpa [#allocation3], 0
    %33 = vsyncpa [#allocation5], 0
    %34 = vsyncpa [#allocation8], 0
    // Predicated region
    $region2: #{tpu_custom_call.1} parent=1 // pred_check
      _
    $region3: #{tpu_custom_call.1} parent=1 // pred_check_branch
      %36 = sbr.rel (0) target = $region5
    $region4: #{tpu_custom_call.1} parent=1 // pred_region
      _
    $region5: #{tpu_custom_call.1} parent=1 // pred_fallthru
      _
    // Predicated region
    $region6: #{tpu_custom_call.1} parent=1 // pred_check
      _
    $region7: #{tpu_custom_call.1} parent=1 // pred_check_branch
      %38 = sbr.rel (0) target = $region9
    $region8: #{tpu_custom_call.1} parent=1 // pred_region
      _
    $region9: #{tpu_custom_call.1} parent=1 // pred_fallthru
      _
    // Predicated region
    $region10: #{tpu_custom_call.1} parent=1 // pred_check
      _
    $region11: #{tpu_custom_call.1} parent=1 // pred_check_branch
      %40 = sbr.rel (0) target = $region13
    $region12: #{tpu_custom_call.1} parent=1 // pred_region
      _
    $region13: #{tpu_custom_call.1} parent=1 // pred_fallthru
      _
    // Predicated region
    $region14: #{tpu_custom_call.1} parent=1 // pred_check
      _
    $region15: #{tpu_custom_call.1} parent=1 // pred_check_branch
      %42 = sbr.rel (0) target = $region17
    $region16: #{tpu_custom_call.1} parent=1 // pred_region
      _
    $region17: #{tpu_custom_call.1} parent=1 // pred_fallthru
      _
    // Predicated region
    $region18: #{tpu_custom_call.1} parent=1 // pred_check
      _
    $region19: #{tpu_custom_call.1} parent=1 // pred_check_branch
      %44 = sbr.rel (0) target = $region21
    $region20: #{tpu_custom_call.1} parent=1 // pred_region
      _
    $region21: #{tpu_custom_call.1} parent=1 // pred_fallthru
      _
    // Predicated region
    $region22: #{tpu_custom_call.1} parent=1 // pred_check
      _
    $region23: #{tpu_custom_call.1} parent=1 // pred_check_branch
      %46 = sbr.rel (0) target = $region25
    $region24: #{tpu_custom_call.1} parent=1 // pred_region
      _
    $region25: #{tpu_custom_call.1} parent=1 // pred_fallthru
      _
    // Predicated region
    $region26: #{tpu_custom_call.1} parent=1 // pred_check
      _
    $region27: #{tpu_custom_call.1} parent=1 // pred_check_branch
      %48 = sbr.rel (0) target = $region29
    $region28: #{tpu_custom_call.1} parent=1 // pred_region
      _
    $region29: #{tpu_custom_call.1} parent=1 // pred_fallthru
      _
    // Predicated region
    $region30: #{tpu_custom_call.1} parent=1 // pred_check
      _
    $region31: #{tpu_custom_call.1} parent=1 // pred_check_branch
      %50 = sbr.rel (0) target = $region33
    $region32: #{tpu_custom_call.1} parent=1 // pred_region
      _
    $region33: #{tpu_custom_call.1} parent=1 // pred_fallthru
      _
    // Predicated region
    $region34: #{tpu_custom_call.1} parent=1 // pred_check
      _
    $region35: #{tpu_custom_call.1} parent=1 // pred_check_branch
      %52 = sbr.rel (0) target = $region37
    $region36: #{tpu_custom_call.1} parent=1 // pred_region
      _
    $region37: #{tpu_custom_call.1} parent=1 // pred_fallthru
      _
    // Predicated region
    $region38: #{tpu_custom_call.1} parent=1 // pred_check
      _
    $region39: #{tpu_custom_call.1} parent=1 // pred_check_branch
      %54 = sbr.rel (0) target = $region41
    $region40: #{tpu_custom_call.1} parent=1 // pred_region
      _
    $region41: #{tpu_custom_call.1} parent=1 // pred_fallthru
      _
    // Predicated region
    $region42: #{tpu_custom_call.1} parent=1 // pred_check
      _
    $region43: #{tpu_custom_call.1} parent=1 // pred_check_branch
      %56 = sbr.rel (0) target = $region45
    $region44: #{tpu_custom_call.1} parent=1 // pred_region
      _
    $region45: #{tpu_custom_call.1} parent=1 // pred_fallthru
      _
    // Predicated region
    $region46: #{tpu_custom_call.1} parent=1 // pred_check
      _
    $region47: #{tpu_custom_call.1} parent=1 // pred_check_branch
      %58 = sbr.rel (0) target = $region49
    $region48: #{tpu_custom_call.1} parent=1 // pred_region
      _
    $region49: #{tpu_custom_call.1} parent=1 // pred_fallthru
      _
    // Predicated region
    $region50: #{tpu_custom_call.1} parent=1 // pred_check
      _
    $region51: #{tpu_custom_call.1} parent=1 // pred_check_branch
      %60 = sbr.rel (0) target = $region53
    $region52: #{tpu_custom_call.1} parent=1 // pred_region
      _
    $region53: #{tpu_custom_call.1} parent=1 // pred_fallthru
      _
    // Predicated region
    $region54: #{tpu_custom_call.1} parent=1 // pred_check
      _
    $region55: #{tpu_custom_call.1} parent=1 // pred_check_branch
      %62 = sbr.rel (0) target = $region57
    $region56: #{tpu_custom_call.1} parent=1 // pred_region
      _
    $region57: #{tpu_custom_call.1} parent=1 // pred_fallthru
      _
    // Predicated region
    $region58: #{tpu_custom_call.1} parent=1 // pred_check
      _
    $region59: #{tpu_custom_call.1} parent=1 // pred_check_branch
      %64 = sbr.rel (0) target = $region61
    $region60: #{tpu_custom_call.1} parent=1 // pred_region
      _
    $region61: #{tpu_custom_call.1} parent=1 // pred_fallthru
      _
    // Predicated region
    $region62: #{tpu_custom_call.1} parent=1 // pred_check
      _
    $region63: #{tpu_custom_call.1} parent=1 // pred_check_branch
      %66 = sbr.rel (0) target = $region65
    $region64: #{tpu_custom_call.1} parent=1 // pred_region
      _
    $region65: #{tpu_custom_call.1} parent=1 // pred_fallthru
      _
    // Predicated region
    $region66: #{tpu_custom_call.1} parent=1 // pred_check
      _
    $region67: #{tpu_custom_call.1} parent=1 // pred_check_branch
      %68 = sbr.rel (0) target = $region69
    $region68: #{tpu_custom_call.1} parent=1 // pred_region
      _
    $region69: #{tpu_custom_call.1} parent=1 // pred_fallthru
      _
    // Predicated region
    $region70: #{tpu_custom_call.1} parent=1 // pred_check
      _
    $region71: #{tpu_custom_call.1} parent=1 // pred_check_branch
      %70 = sbr.rel (0) target = $region73
    $region72: #{tpu_custom_call.1} parent=1 // pred_region
      _
    $region73: #{tpu_custom_call.1} parent=1 // pred_fallthru
      _
    // Predicated region
    $region74: #{tpu_custom_call.1} parent=1 // pred_check
      _
    $region75: #{tpu_custom_call.1} parent=1 // pred_check_branch
      %72 = sbr.rel (0) target = $region77
    $region76: #{tpu_custom_call.1} parent=1 // pred_region
      _
    $region77: #{tpu_custom_call.1} parent=1 // pred_fallthru
      _
    // Predicated region
    $region78: #{tpu_custom_call.1} parent=1 // pred_check
      _
    $region79: #{tpu_custom_call.1} parent=1 // pred_check_branch
      %74 = sbr.rel (0) target = $region81
    $region80: #{tpu_custom_call.1} parent=1 // pred_region
      _
    $region81: #{tpu_custom_call.1} parent=1 // pred_fallthru
      _
    // Predicated region
    $region82: #{tpu_custom_call.1} parent=1 // pred_check
      _
    $region83: #{tpu_custom_call.1} parent=1 // pred_check_branch
      %76 = sbr.rel (0) target = $region85
    $region84: #{tpu_custom_call.1} parent=1 // pred_region
      _
    $region85: #{tpu_custom_call.1} parent=1 // pred_fallthru
      _
    // Predicated region
    $region86: #{tpu_custom_call.1} parent=1 // pred_check
      _
    $region87: #{tpu_custom_call.1} parent=1 // pred_check_branch
      %78 = sbr.rel (0) target = $region89
    $region88: #{tpu_custom_call.1} parent=1 // pred_region
      _
    $region89: #{tpu_custom_call.1} parent=1 // pred_fallthru
      _
    %v79 = vld [vmem:[%s0] sm:$0x3]
    %v80 = vadd.f32 %v79, 1.0
    %v81 = vlog2.pop %v80
    %v82 = vmul.f32 %v81, 0.6931472
    %v83 = vmul.f32 -0.5, %v79
    %v84 = vadd.f32 %v83, 1.0
    %v85 = vmul.f32 %v84, %v79
    %v86 = vand.u32 2147483647, %v79
    %vm87 = vcmp.lt.f32.partialorder %v86, 0.0004427343
    %v88 = vsel %vm87, %v85, %v82
    %v89 = vld [vmem:[%s1] sm:$0x3]
    %v90 = vmul.f32 %v88, %v89
    %v91 = vld [vmem:[%s4] sm:$0xff]
    %v92 = vld [vmem:[%s4 + $0x8] sm:$0xff]
    %v93 = vld [vmem:[%s4 + $0x10] sm:$0xff]
    %v94 = vld [vmem:[%s4 + $0x18] sm:$0xff]
    %v95 = vld [vmem:[%s4 + $0x20] sm:$0xff]
    %v96 = vld [vmem:[%s5] sm:$0x1]
    %v98 = vperm.slane %v96, 0
    %vm100 = vcmask 326656
    %v102 = vsel %vm100, %v90, 0
    %104 = vmatpush.msra.mxu0 0.0
    %105 = vmatpush.msra.mxu0 0.0
    %106 = vmatpush.msra.mxu0 0.0
    %107 = vmatpush.msra.mxu0 0.0
    %108 = vmatpush.msra.mxu0 0.0
    %109 = vmatpush.msra.mxu0 0.0
    %110 = vmatpush.msra.mxu0 0.0
    %111 = vmatpush.msra.mxu0 0.0
    %112 = vmatpush.msra.mxu0 0.0
    %113 = vmatpush.msra.mxu0 0.0
    %114 = vmatpush.msra.mxu0 0.0
    %115 = vmatpush.msra.mxu0 %v95
    %116 = vmatpush.msra.mxu0 %v94
    %117 = vmatpush.msra.mxu0 %v93
    %118 = vmatpush.msra.mxu0 %v92
    %119 = vmatpush.msra.mxu0 %v91
    %120 = vmatmul.f32.gmra.mxu0 %v102
    %v121 = vpop.f32.mrf.mxu0
    %v122 = vadd.f32 %v98, %v121
    %123 = vdwg.mxu0
    %v124 = vmin.f32 %v122, 20.0
    %v125 = vmul.f32 %v124, 1.442695
    %v126 = vpow.pop %v125
    %v127 = vadd.f32 %v126, 1.0
    %v128 = vmul.f32 %v127, %v127
    %v129 = vsub.f32 %v128, 1.0
    %v130 = vmul.f32 %v122, %v129
    %v131 = vadd.f32 %v128, 1.0
    %v132 = vrcp.pop %v131
    %v133 = vmul.f32 %v130, %v132
    %v134 = vld [vmem:[%s8] sm:$0xff]
    %v135 = vld [vmem:[%s8 + $0x8] sm:$0xff]
    %v136 = vld [vmem:[%s8 + $0x10] sm:$0xff]
    %v137 = vld [vmem:[%s8 + $0x18] sm:$0xff]
    %v138 = vld [vmem:[%s9] sm:$0x1]
    %v140 = vperm.slane %v138, 0
    %vm142 = vcmask 261120
    %v144 = vsel %vm142, %v133, 0
    %146 = vmatpush.msra.mxu0 0.0
    %147 = vmatpush.msra.mxu0 0.0
    %148 = vmatpush.msra.mxu0 0.0
    %149 = vmatpush.msra.mxu0 0.0
    %150 = vmatpush.msra.mxu0 0.0
    %151 = vmatpush.msra.mxu0 0.0
    %152 = vmatpush.msra.mxu0 0.0
    %153 = vmatpush.msra.mxu0 0.0
    %154 = vmatpush.msra.mxu0 0.0
    %155 = vmatpush.msra.mxu0 0.0
    %156 = vmatpush.msra.mxu0 0.0
    %157 = vmatpush.msra.mxu0 0.0
    %158 = vmatpush.msra.mxu0 %v137
    %159 = vmatpush.msra.mxu0 %v136
    %160 = vmatpush.msra.mxu0 %v135
    %161 = vmatpush.msra.mxu0 %v134
    %162 = vmatmul.f32.gmra.mxu0 %v144
    %v163 = vpop.f32.mrf.mxu0
    %v164 = vadd.f32 %v140, %v163
    %165 = vdwg.mxu0
    %v166 = vmin.f32 %v164, 20.0
    %v167 = vmul.f32 %v166, 1.442695
    %v168 = vpow.pop %v167
    %v169 = vadd.f32 %v168, 1.0
    %v170 = vmul.f32 %v169, %v169
    %v171 = vsub.f32 %v170, 1.0
    %v172 = vmul.f32 %v164, %v171
    %v173 = vadd.f32 %v170, 1.0
    %v174 = vrcp.pop %v173
    %v175 = vmul.f32 %v172, %v174
    %v176 = vld [vmem:[%s10] sm:$0xff]
    %v177 = vld [vmem:[%s10 + $0x8] sm:$0xff]
    %v178 = vld [vmem:[%s11] sm:$0x1]
    %v180 = vperm.slane %v178, 0
    %vm182 = vcmask 130048
    %v184 = vsel %vm182, %v175, 0
    %186 = vmatpush.msra.mxu0 0.0
    %187 = vmatpush.msra.mxu0 0.0
    %188 = vmatpush.msra.mxu0 0.0
    %189 = vmatpush.msra.mxu0 0.0
    %190 = vmatpush.msra.mxu0 0.0
    %191 = vmatpush.msra.mxu0 0.0
    %192 = vmatpush.msra.mxu0 0.0
    %193 = vmatpush.msra.mxu0 0.0
    %194 = vmatpush.msra.mxu0 0.0
    %195 = vmatpush.msra.mxu0 0.0
    %196 = vmatpush.msra.mxu0 0.0
    %197 = vmatpush.msra.mxu0 0.0
    %198 = vmatpush.msra.mxu0 0.0
    %199 = vmatpush.msra.mxu0 0.0
    %200 = vmatpush.msra.mxu0 %v177
    %201 = vmatpush.msra.mxu0 %v176
    %202 = vmatmul.f32.gmra.mxu0 %v184
    %v203 = vpop.f32.mrf.mxu0
    %v204 = vadd.f32 %v180, %v203
    %205 = vdwg.mxu0
    %v206 = vld [vmem:[%s12] sm:$0xff]
    %v207 = vld [vmem:[%s12 + $0x8] sm:$0xff]
    %v208 = vld [vmem:[%s13] sm:$0x1]
    %v210 = vperm.slane %v208, 0
    %212 = vmatpush.msra.mxu0 0.0
    %213 = vmatpush.msra.mxu0 0.0
    %214 = vmatpush.msra.mxu0 0.0
    %215 = vmatpush.msra.mxu0 0.0
    %216 = vmatpush.msra.mxu0 0.0
    %217 = vmatpush.msra.mxu0 0.0
    %218 = vmatpush.msra.mxu0 0.0
    %219 = vmatpush.msra.mxu0 0.0
    %220 = vmatpush.msra.mxu0 0.0
    %221 = vmatpush.msra.mxu0 0.0
    %222 = vmatpush.msra.mxu0 0.0
    %223 = vmatpush.msra.mxu0 0.0
    %224 = vmatpush.msra.mxu0 0.0
    %225 = vmatpush.msra.mxu0 0.0
    %226 = vmatpush.msra.mxu0 %v207
    %227 = vmatpush.msra.mxu0 %v206
    %228 = vmatmul.f32.gmra.mxu0 %v184
    %v229 = vpop.f32.mrf.mxu0
    %v230 = vadd.f32 %v210, %v229
    %231 = vdwg.mxu0
    %v232 = vsub.f32 0.0, %v230
    %vm233 = vcmp.lt.f32.partialorder %v232, 0.0
    %v234 = vsel %vm233, 1, 0
    %v235 = vcvt.s32.f32 %v234
    %v236 = vmax.f32 %v232, 0.0
    %v237 = vsub.f32 0.0, %v236
    %v238 = vmul.f32 %v237, 1.442695
    %v239 = vpow.pop %v238
    %v240 = vadd.f32 %v239, 1e-12
    %v241 = vrcp.pop %v240
    %v242 = vmin.f32 %v232, 0.0
    %v243 = vmul.f32 %v242, 1.442695
    %v244 = vpow.pop %v243
    %v245 = vmul.f32 %v235, %v244
    %v246 = vsub.f32 1.0, %v235
    %v247 = vmul.f32 %v246, %v241
    %v248 = vadd.f32 %v245, %v247
    %v249 = vld [vmem:[%s2] sm:$0x3]
    %v250 = vadd.f32 %v249, 1.0
    %v251 = vlog2.pop %v250
    %v252 = vmul.f32 %v251, 0.6931472
    %v253 = vmul.f32 -0.5, %v249
    %v254 = vadd.f32 %v253, 1.0
    %v255 = vmul.f32 %v254, %v249
    %v256 = vand.u32 2147483647, %v249
    %vm257 = vcmp.lt.f32.partialorder %v256, 0.0004427343
    %v258 = vsel %vm257, %v255, %v252
    %v259 = vld [vmem:[%s3] sm:$0x3]
    %v260 = vmul.f32 %v258, %v259
    %v261 = vld [vmem:[%s6] sm:$0xff]
    %v262 = vld [vmem:[%s6 + $0x8] sm:$0xff]
    %v263 = vld [vmem:[%s6 + $0x10] sm:$0xff]
    %v264 = vld [vmem:[%s7] sm:$0x1]
    %v266 = vperm.slane %v264, 0
    %vm268 = vcmask 195584
    %v270 = vsel %vm268, %v260, 0
    %272 = vmatpush.msra.mxu0 0.0
    %273 = vmatpush.msra.mxu0 0.0
    %274 = vmatpush.msra.mxu0 0.0
    %275 = vmatpush.msra.mxu0 0.0
    %276 = vmatpush.msra.mxu0 0.0
    %277 = vmatpush.msra.mxu0 0.0
    %278 = vmatpush.msra.mxu0 0.0
    %279 = vmatpush.msra.mxu0 0.0
    %280 = vmatpush.msra.mxu0 0.0
    %281 = vmatpush.msra.mxu0 0.0
    %282 = vmatpush.msra.mxu0 0.0
    %283 = vmatpush.msra.mxu0 0.0
    %284 = vmatpush.msra.mxu0 0.0
    %285 = vmatpush.msra.mxu0 %v263
    %286 = vmatpush.msra.mxu0 %v262
    %287 = vmatpush.msra.mxu0 %v261
    %288 = vmatmul.f32.gmra.mxu0 %v270
    %v289 = vpop.f32.mrf.mxu0
    %v290 = vadd.f32 %v266, %v289
    %291 = vdwg.mxu0
    %v292 = vmin.f32 %v290, 20.0
    %v293 = vmul.f32 %v292, 1.442695
    %v294 = vpow.pop %v293
    %v295 = vadd.f32 %v294, 1.0
    %v296 = vmul.f32 %v295, %v295
    %v297 = vsub.f32 %v296, 1.0
    %v298 = vmul.f32 %v290, %v297
    %v299 = vadd.f32 %v296, 1.0
    %v300 = vrcp.pop %v299
    %v301 = vmul.f32 %v298, %v300
    %v303 = vsel %vm142, %v301, 0
    %305 = vmatpush.msra.mxu0 0.0
    %306 = vmatpush.msra.mxu0 0.0
    %307 = vmatpush.msra.mxu0 0.0
    %308 = vmatpush.msra.mxu0 0.0
    %309 = vmatpush.msra.mxu0 0.0
    %310 = vmatpush.msra.mxu0 0.0
    %311 = vmatpush.msra.mxu0 0.0
    %312 = vmatpush.msra.mxu0 0.0
    %313 = vmatpush.msra.mxu0 0.0
    %314 = vmatpush.msra.mxu0 0.0
    %315 = vmatpush.msra.mxu0 0.0
    %316 = vmatpush.msra.mxu0 0.0
    %317 = vmatpush.msra.mxu0 %v137
    %318 = vmatpush.msra.mxu0 %v136
    %319 = vmatpush.msra.mxu0 %v135
    %320 = vmatpush.msra.mxu0 %v134
    %321 = vmatmul.f32.gmra.mxu0 %v303
    %v322 = vpop.f32.mrf.mxu0
    %v323 = vadd.f32 %v140, %v322
    %324 = vdwg.mxu0
    %v325 = vmin.f32 %v323, 20.0
    %v326 = vmul.f32 %v325, 1.442695
    %v327 = vpow.pop %v326
    %v328 = vadd.f32 %v327, 1.0
    %v329 = vmul.f32 %v328, %v328
    %v330 = vsub.f32 %v329, 1.0
    %v331 = vmul.f32 %v323, %v330
    %v332 = vadd.f32 %v329, 1.0
    %v333 = vrcp.pop %v332
    %v334 = vmul.f32 %v331, %v333
    %v336 = vsel %vm182, %v334, 0
    %338 = vmatpush.msra.mxu0 0.0
    %339 = vmatpush.msra.mxu0 0.0
    %340 = vmatpush.msra.mxu0 0.0
    %341 = vmatpush.msra.mxu0 0.0
    %342 = vmatpush.msra.mxu0 0.0
    %343 = vmatpush.msra.mxu0 0.0
    %344 = vmatpush.msra.mxu0 0.0
    %345 = vmatpush.msra.mxu0 0.0
    %346 = vmatpush.msra.mxu0 0.0
    %347 = vmatpush.msra.mxu0 0.0
    %348 = vmatpush.msra.mxu0 0.0
    %349 = vmatpush.msra.mxu0 0.0
    %350 = vmatpush.msra.mxu0 0.0
    %351 = vmatpush.msra.mxu0 0.0
    %352 = vmatpush.msra.mxu0 %v177
    %353 = vmatpush.msra.mxu0 %v176
    %354 = vmatmul.f32.gmra.mxu0 %v336
    %v355 = vpop.f32.mrf.mxu0
    %v356 = vadd.f32 %v180, %v355
    %357 = vdwg.mxu0
    %358 = vmatpush.msra.mxu0 0.0
    %359 = vmatpush.msra.mxu0 0.0
    %360 = vmatpush.msra.mxu0 0.0
    %361 = vmatpush.msra.mxu0 0.0
    %362 = vmatpush.msra.mxu0 0.0
    %363 = vmatpush.msra.mxu0 0.0
    %364 = vmatpush.msra.mxu0 0.0
    %365 = vmatpush.msra.mxu0 0.0
    %366 = vmatpush.msra.mxu0 0.0
    %367 = vmatpush.msra.mxu0 0.0
    %368 = vmatpush.msra.mxu0 0.0
    %369 = vmatpush.msra.mxu0 0.0
    %370 = vmatpush.msra.mxu0 0.0
    %371 = vmatpush.msra.mxu0 0.0
    %372 = vmatpush.msra.mxu0 %v207
    %373 = vmatpush.msra.mxu0 %v206
    %374 = vmatmul.f32.gmra.mxu0 %v336
    %v375 = vpop.f32.mrf.mxu0
    %v376 = vadd.f32 %v210, %v375
    %377 = vdwg.mxu0
    %v378 = vsub.f32 0.0, %v376
    %vm379 = vcmp.lt.f32.partialorder %v378, 0.0
    %v380 = vsel %vm379, 1, 0
    %v381 = vcvt.s32.f32 %v380
    %v382 = vmax.f32 %v378, 0.0
    %v383 = vsub.f32 0.0, %v382
    %v384 = vmul.f32 %v383, 1.442695
    %v385 = vpow.pop %v384
    %v386 = vadd.f32 %v385, 1e-12
    %v387 = vrcp.pop %v386
    %v388 = vmin.f32 %v378, 0.0
    %v389 = vmul.f32 %v388, 1.442695
    %v390 = vpow.pop %v389
    %v391 = vmul.f32 %v381, %v390
    %v392 = vsub.f32 1.0, %v381
    %v393 = vmul.f32 %v392, %v387
    %v394 = vadd.f32 %v391, %v393
    %v395 = vadd.f32 %v248, 1.0
    %v396 = vmul.f32 %v204, %v248
    %v397 = vadd.f32 %v396, 0.0
    %v398 = vadd.f32 %v395, %v394
    %v399 = vmul.f32 %v356, %v394
    %v400 = vadd.f32 %v397, %v399
    %v401 = vrcp.pop %v398
    %v402 = vmul.f32 %v400, %v401
    %v403 = vadd.f32 %v401, 1e-12
    %v404 = vlog2.pop %v403
    %v405 = vmul.f32 %v404, 0.6931472
    %vm406 = vcmask 58368
    %407 = vst.msk [vmem:[#allocation2] sm:$0x3] %vm406, %v402
    %408 = vst.msk [vmem:[#allocation4] sm:$0x3] %vm406, %v405
    %v409 = vld [vmem:[%s14] sm:$0xff]
    %v410 = vld [vmem:[%s15] sm:$0x1]
    %v412 = vperm.slane %v410, 0
    %vm414 = vcmask 64512
    %v416 = vsel %vm414, %v402, 0
    %418 = vmatpush.msra.mxu0 0.0
    %419 = vmatpush.msra.mxu0 0.0
    %420 = vmatpush.msra.mxu0 0.0
    %421 = vmatpush.msra.mxu0 0.0
    %422 = vmatpush.msra.mxu0 0.0
    %423 = vmatpush.msra.mxu0 0.0
    %424 = vmatpush.msra.mxu0 0.0
    %425 = vmatpush.msra.mxu0 0.0
    %426 = vmatpush.msra.mxu0 0.0
    %427 = vmatpush.msra.mxu0 0.0
    %428 = vmatpush.msra.mxu0 0.0
    %429 = vmatpush.msra.mxu0 0.0
    %430 = vmatpush.msra.mxu0 0.0
    %431 = vmatpush.msra.mxu0 0.0
    %432 = vmatpush.msra.mxu0 0.0
    %433 = vmatpush.msra.mxu0 %v409
    %434 = vmatmul.f32.gmra.mxu0 %v416
    %v435 = vpop.f32.mrf.mxu0
    %v436 = vadd.f32 %v412, %v435
    %437 = vdwg.mxu0
    %v438 = vmin.f32 %v436, 20.0
    %v439 = vmul.f32 %v438, 1.442695
    %v440 = vpow.pop %v439
    %v441 = vadd.f32 %v440, 1.0
    %v442 = vmul.f32 %v441, %v441
    %v443 = vsub.f32 %v442, 1.0
    %v444 = vmul.f32 %v436, %v443
    %v445 = vadd.f32 %v442, 1.0
    %v446 = vrcp.pop %v445
    %v447 = vmul.f32 %v444, %v446
    %v448 = vld [vmem:[%s16] sm:$0xff]
    %v449 = vld [vmem:[%s16 + $0x8] sm:$0xff]
    %v450 = vld [vmem:[%s17] sm:$0x1]
    %v452 = vperm.slane %v450, 0
    %v455 = vsel %vm182, %v447, 0
    %457 = vmatpush.msra.mxu0 0.0
    %458 = vmatpush.msra.mxu0 0.0
    %459 = vmatpush.msra.mxu0 0.0
    %460 = vmatpush.msra.mxu0 0.0
    %461 = vmatpush.msra.mxu0 0.0
    %462 = vmatpush.msra.mxu0 0.0
    %463 = vmatpush.msra.mxu0 0.0
    %464 = vmatpush.msra.mxu0 0.0
    %465 = vmatpush.msra.mxu0 0.0
    %466 = vmatpush.msra.mxu0 0.0
    %467 = vmatpush.msra.mxu0 0.0
    %468 = vmatpush.msra.mxu0 0.0
    %469 = vmatpush.msra.mxu0 0.0
    %470 = vmatpush.msra.mxu0 0.0
    %471 = vmatpush.msra.mxu0 %v449
    %472 = vmatpush.msra.mxu0 %v448
    %473 = vmatmul.f32.gmra.mxu0 %v455
    %v474 = vpop.f32.mrf.mxu0
    %v475 = vadd.f32 %v452, %v474
    %476 = vdwg.mxu0
    %v477 = vmin.f32 %v475, 20.0
    %v478 = vmul.f32 %v477, 1.442695
    %v479 = vpow.pop %v478
    %v480 = vadd.f32 %v479, 1.0
    %v481 = vmul.f32 %v480, %v480
    %v482 = vsub.f32 %v481, 1.0
    %v483 = vmul.f32 %v475, %v482
    %v484 = vadd.f32 %v481, 1.0
    %v485 = vrcp.pop %v484
    %v486 = vmul.f32 %v483, %v485
    %v487 = vld [vmem:[%s18] sm:$0xff]
    %v488 = vld [vmem:[%s18 + $0x8] sm:$0xff]
    %v489 = vld [vmem:[%s18 + $0x10] sm:$0xff]
    %v490 = vld [vmem:[%s18 + $0x18] sm:$0xff]
    %v491 = vld [vmem:[%s19] sm:$0x1]
    %v493 = vperm.slane %v491, 0
    %v496 = vsel %vm142, %v486, 0
    %498 = vmatpush.msra.mxu0 0.0
    %499 = vmatpush.msra.mxu0 0.0
    %500 = vmatpush.msra.mxu0 0.0
    %501 = vmatpush.msra.mxu0 0.0
    %502 = vmatpush.msra.mxu0 0.0
    %503 = vmatpush.msra.mxu0 0.0
    %504 = vmatpush.msra.mxu0 0.0
    %505 = vmatpush.msra.mxu0 0.0
    %506 = vmatpush.msra.mxu0 0.0
    %507 = vmatpush.msra.mxu0 0.0
    %508 = vmatpush.msra.mxu0 0.0
    %509 = vmatpush.msra.mxu0 0.0
    %510 = vmatpush.msra.mxu0 %v490
    %511 = vmatpush.msra.mxu0 %v489
    %512 = vmatpush.msra.mxu0 %v488
    %513 = vmatpush.msra.mxu0 %v487
    %514 = vmatmul.f32.gmra.mxu0 %v496
    %v515 = vpop.f32.mrf.mxu0
    %v516 = vadd.f32 %v493, %v515
    %517 = vdwg.mxu0
    %vm518 = vcmask 517120
    %519 = vst.msk [vmem:[#allocation6] sm:$0x3] %vm518, %v516
    %v520 = vrcp.pop %v395
    %v521 = vmul.f32 %v396, %v520
    %v522 = vadd.f32 %v520, 1e-12
    %v523 = vlog2.pop %v522
    %v524 = vmul.f32 %v523, 0.6931472
    %v525 = vmul.f32 %v524, 0.5
    %v526 = vmul.f32 %v525, 1.442695
    %v527 = vpow.pop %v526
    %v528 = vld [vmem:[%s20] sm:$0x3]
    %v529 = vmul.f32 %v527, %v528
    %v530 = vadd.f32 %v521, %v529
    %531 = vst.msk [vmem:[#allocation7] sm:$0x3] %vm406, %v530
    %v532 = vadd.f32 %v394, 1.0
    %v533 = vrcp.pop %v532
    %v534 = vmul.f32 %v399, %v533
    %v535 = vadd.f32 %v533, 1e-12
    %v536 = vlog2.pop %v535
    %v537 = vmul.f32 %v536, 0.6931472
    %v538 = vmul.f32 %v537, 0.5
    %v539 = vmul.f32 %v538, 1.442695
    %v540 = vpow.pop %v539
    %v541 = vld [vmem:[%s21] sm:$0x3]
    %v542 = vmul.f32 %v540, %v541
    %v543 = vadd.f32 %v534, %v542
    %544 = vst.msk [vmem:[#allocation9] sm:$0x3] %vm406, %v543
    // Predicated region
    $region90: #{tpu_custom_call.1} parent=1 // pred_check
      _
    $region91: #{tpu_custom_call.1} parent=1 // pred_check_branch
      %546 = sbr.rel (0) target = $region93
    $region92: #{tpu_custom_call.1} parent=1 // pred_region
      %548 = vsyncadd [#allocation3], 0
      %s550 = sshll.u32 [#allocation2], 4
      %s551 = int_to_ptr.vmem [resolvable:$true] %s550
      %s552 = sshll.u32 %s22, 4
      %s553 = int_to_ptr.hbm [resolvable:$true] %s552
      %555 = dma.vmem_to_hbm [thread:$0]  %s551, 32, %s553, [#allocation3]
    $region93: #{tpu_custom_call.1} parent=1 // pred_fallthru
      _
    // Predicated region
    $region94: #{tpu_custom_call.1} parent=1 // pred_check
      _
    $region95: #{tpu_custom_call.1} parent=1 // pred_check_branch
      %557 = sbr.rel (0) target = $region97
    $region96: #{tpu_custom_call.1} parent=1 // pred_region
      %559 = vsyncadd [#allocation5], 0
      %s561 = sshll.u32 [#allocation4], 4
      %s562 = int_to_ptr.vmem [resolvable:$true] %s561
      %s563 = sshll.u32 %s23, 4
      %s564 = int_to_ptr.hbm [resolvable:$true] %s563
      %566 = dma.vmem_to_hbm [thread:$0]  %s562, 32, %s564, [#allocation5]
    $region97: #{tpu_custom_call.1} parent=1 // pred_fallthru
      _
    // Predicated region
    $region98: #{tpu_custom_call.1} parent=1 // pred_check
      _
    $region99: #{tpu_custom_call.1} parent=1 // pred_check_branch
      %568 = sbr.rel (0) target = $region101
    $region100: #{tpu_custom_call.1} parent=1 // pred_region
      %570 = vsyncadd [#allocation5], 0
      %s572 = sshll.u32 [#allocation6], 4
      %s573 = int_to_ptr.vmem [resolvable:$true] %s572
      %s574 = sshll.u32 %s24, 4
      %s575 = int_to_ptr.hbm [resolvable:$true] %s574
      %577 = dma.vmem_to_hbm [thread:$0]  %s573, 32, %s575, [#allocation5]
    $region101: #{tpu_custom_call.1} parent=1 // pred_fallthru
      _
    // Predicated region
    $region102: #{tpu_custom_call.1} parent=1 // pred_check
      _
    $region103: #{tpu_custom_call.1} parent=1 // pred_check_branch
      %579 = sbr.rel (0) target = $region105
    $region104: #{tpu_custom_call.1} parent=1 // pred_region
      %581 = vsyncadd [#allocation8], 0
      %s583 = sshll.u32 [#allocation7], 4
      %s584 = int_to_ptr.vmem [resolvable:$true] %s583
      %s585 = sshll.u32 %s25, 4
      %s586 = int_to_ptr.hbm [resolvable:$true] %s585
      %588 = dma.vmem_to_hbm [thread:$0]  %s584, 32, %s586, [#allocation8]
    $region105: #{tpu_custom_call.1} parent=1 // pred_fallthru
      _
    // Predicated region
    $region106: #{tpu_custom_call.1} parent=1 // pred_check
      _
    $region107: #{tpu_custom_call.1} parent=1 // pred_check_branch
      %590 = sbr.rel (0) target = $region109
    $region108: #{tpu_custom_call.1} parent=1 // pred_region
      %592 = vsyncadd [#allocation8], 0
      %s594 = sshll.u32 [#allocation9], 4
      %s595 = int_to_ptr.vmem [resolvable:$true] %s594
      %s596 = sshll.u32 %s26, 4
      %s597 = int_to_ptr.hbm [resolvable:$true] %s596
      %599 = dma.vmem_to_hbm [thread:$0]  %s595, 32, %s597, [#allocation8]
    $region109: #{tpu_custom_call.1} parent=1 // pred_fallthru
      _
    // Predicated region
    $region110: #{tpu_custom_call.1} parent=1 // pred_check
      _
    $region111: #{tpu_custom_call.1} parent=1 // pred_check_branch
      %601 = sbr.rel (0) target = $region113
    $region112: #{tpu_custom_call.1} parent=1 // pred_region
      %603 = dma.done [#allocation3], 32
    $region113: #{tpu_custom_call.1} parent=1 // pred_fallthru
      _
    // Predicated region
    $region114: #{tpu_custom_call.1} parent=1 // pred_check
      _
    $region115: #{tpu_custom_call.1} parent=1 // pred_check_branch
      %605 = sbr.rel (0) target = $region117
    $region116: #{tpu_custom_call.1} parent=1 // pred_region
      %607 = dma.done [#allocation5], 32
    $region117: #{tpu_custom_call.1} parent=1 // pred_fallthru
      _
    // Predicated region
    $region118: #{tpu_custom_call.1} parent=1 // pred_check
      _
    $region119: #{tpu_custom_call.1} parent=1 // pred_check_branch
      %609 = sbr.rel (0) target = $region121
    $region120: #{tpu_custom_call.1} parent=1 // pred_region
      %611 = dma.done [#allocation5], 32
    $region121: #{tpu_custom_call.1} parent=1 // pred_fallthru
      _
    // Predicated region
    $region122: #{tpu_custom_call.1} parent=1 // pred_check
      _
    $region123: #{tpu_custom_call.1} parent=1 // pred_check_branch
      %613 = sbr.rel (0) target = $region125
    $region124: #{tpu_custom_call.1} parent=1 // pred_region
      %615 = dma.done [#allocation8], 32
    $region125: #{tpu_custom_call.1} parent=1 // pred_fallthru
      _
    // Predicated region
    $region126: #{tpu_custom_call.1} parent=1 // pred_check
      _
    $region127: #{tpu_custom_call.1} parent=1 // pred_check_branch
      %617 = sbr.rel (0) target = $region129
    $region128: #{tpu_custom_call.1} parent=1 // pred_region
      %619 = dma.done [#allocation8], 32
    $region129: #{tpu_custom_call.1} parent=1 // pred_fallthru
      _
    %620 = vsyncpa [#allocation3], 1
    %621 = vsyncpa [#allocation5], 1
    %622 = vsyncpa [#allocation8], 1

</llo_original>
